<compile_context>
chip_gen: v5e
topology: v5e:2x2
jax: 0.10.0
libtpu: 0.0.40
codegen_flags: <defaults>
</compile_context>

<pallas_src>
import jax
import jax.numpy as jnp
from jax.experimental import pallas as pl
from jax.experimental.pallas import tpu as pltpu


def _round_up(x, m):
    return (x + m - 1) // m * m


def _autoencoder_kernel(y_ref, w1_ref, b1_ref, w2_ref, b2_ref, w3_ref, b3_ref,
                        wd_ref, code_ref, out_ref):
    """Whole MLP chain (3x Linear+ReLU/Softmax encoder, 1 Linear decoder) for one
    batch tile.  Matmul inputs stay in the (possibly bf16) storage dtype, accumulation
    is fp32; bias/ReLU/softmax run in fp32 on the accumulators."""
    y = y_ref[...]

    # encoder layer 1: Linear(L -> L//2) + ReLU
    h1 = jnp.dot(y, w1_ref[...], preferred_element_type=jnp.float32) + b1_ref[...]
    h1 = jnp.maximum(h1, 0.0)

    # encoder layer 2: Linear(L//2 -> L//4) + ReLU
    h2 = jnp.dot(h1.astype(w2_ref.dtype), w2_ref[...],
                 preferred_element_type=jnp.float32) + b2_ref[...]
    h2 = jnp.maximum(h2, 0.0)

    # encoder layer 3: Linear(L//4 -> P_pad) + Softmax over the feature axis.
    # Padded columns have zero weights and a -1e30 bias, so exp() is exactly 0 there
    # and the softmax over 128 lanes equals the softmax over the first P lanes.
    # NOTE: a NaN/Inf in the real logits propagates to the whole row (same as torch).
    logits = jnp.dot(h2.astype(w3_ref.dtype), w3_ref[...],
                     preferred_element_type=jnp.float32) + b3_ref[...]
    m = jnp.max(logits, axis=1, keepdims=True)
    e = jnp.exp(logits - m)
    denom = jnp.sum(e, axis=1, keepdims=True)
    code = e / denom                      # exact division: rows sum to 1 (simplex)

    # decoder: Linear(P_pad -> L), no bias (padded rows of wd are zero).
    out = jnp.dot(code.astype(wd_ref.dtype), wd_ref[...],
                  preferred_element_type=jnp.float32)

    code_ref[...] = code.astype(code_ref.dtype)   # lane-dense 128-wide store
    out_ref[...] = out.astype(out_ref.dtype)


def autoencoder_forward(y, params, *, batch_tile=2048, compute_dtype=jnp.bfloat16):
    """y: (N, L) float32.  params: dict of pre-transposed weights/biases (fp32).
    Returns (code (N, P), output (N, L)) in `compute_dtype`.

    batch_tile: rows per grid step (128-aligned).  Default 2048 amortizes the per-step
    overhead on v6e/v7x; v5e also fits comfortably under the explicit 48 MiB VMEM limit.
    compute_dtype: storage/MXU-input dtype for activations & weights (accumulation is
    always fp32).  Use jnp.float32 for an exact-fp32 path.
    """
    N, L = y.shape
    w1, b1 = params["w1"], params["b1"]   # (L, L//2), (1, L//2)
    w2, b2 = params["w2"], params["b2"]   # (L//2, L//4), (1, L//4)
    w3, b3 = params["w3"], params["b3"]   # (L//4, P), (1, P)
    wd = params["wd"]                     # (P, L)
    P = w3.shape[1]

    # --- lane-dense code layout: pad P up to a multiple of 128 lanes --------------
    P_pad = _round_up(max(P, 128), 128)
    w3p = jnp.pad(w3, ((0, 0), (0, P_pad - P)))                           # zero cols
    b3p = jnp.pad(b3, ((0, 0), (0, P_pad - P)), constant_values=-1e30)    # -> exp()=0
    wdp = jnp.pad(wd, ((0, P_pad - P), (0, 0)))                           # zero rows

    # --- dtype prep: bf16 (default) for y + weights, fp32 for the tiny biases -----
    cd = jnp.dtype(compute_dtype)
    y_c = y.astype(cd)
    w1c, w2c, w3c, wdc = (w.astype(cd) for w in (w1, w2, w3p, wdp))
    b1f, b2f, b3f = (b.astype(jnp.float32) for b in (b1, b2, b3p))

    # --- batch tiling: pad N only to a 128 multiple; partial last block via cdiv ---
    N_pad = _round_up(N, 128)
    if N_pad != N:
        y_c = jnp.pad(y_c, ((0, N_pad - N), (0, 0)))
    # cap the tile at ~half the batch so the grid has >=2 parallel steps (v7x megacore)
    half = _round_up(pl.cdiv(N_pad, 2), 128)
    bt = max(128, min(_round_up(batch_tile, 128), half))
    grid_steps = pl.cdiv(N_pad, bt)

    # constant-index full blocks: weights stay resident in VMEM across grid steps
    full = lambda shape: pl.BlockSpec(shape, lambda i: (0, 0))

    L2, L4 = L // 2, L // 4
    itemsize = cd.itemsize
    flops = 2 * N_pad * (L * L2 + L2 * L4 + L4 * P_pad + P_pad * L)
    transcendentals = N_pad * P_pad                               # exp per logit lane
    weight_bytes = itemsize * (L * L2 + L2 * L4 + L4 * P_pad + P_pad * L) \
        + 4 * (L2 + L4 + P_pad)
    bytes_accessed = itemsize * (2 * N_pad * L + N_pad * P_pad) + weight_bytes
    cost = pl.CostEstimate(flops=flops, transcendentals=transcendentals,
                           bytes_accessed=bytes_accessed)

    kernel = pl.pallas_call(
        _autoencoder_kernel,
        out_shape=(
            jax.ShapeDtypeStruct((N_pad, P_pad), cd),   # lane-dense code (sliced below)
            jax.ShapeDtypeStruct((N_pad, L), cd),
        ),
        grid=(grid_steps,),
        in_specs=[
            pl.BlockSpec((bt, L), lambda i: (i, 0)),          # y tile
            full(w1c.shape), full(b1f.shape),
            full(w2c.shape), full(b2f.shape),
            full(w3c.shape), full(b3f.shape),
            full(wdc.shape),
        ],
        out_specs=(
            pl.BlockSpec((bt, P_pad), lambda i: (i, 0)),      # lane-dense code tile
            pl.BlockSpec((bt, L), lambda i: (i, 0)),
        ),
        compiler_params=pltpu.CompilerParams(
            dimension_semantics=("parallel",),
            vmem_limit_bytes=48 * 1024 * 1024),
        cost_estimate=cost,
    )
    code_pad, out_pad = kernel(y_c, w1c, b1f, w2c, b2f, w3c, b3f, wdc)
    return code_pad[:N, :P], out_pad[:N, :]


def init_params(key, L, P):
    """Deterministic parameter init matching the nn.Linear shapes.
    PyTorch stores Linear weight as (out, in); we store the transpose (in, out)."""
    ks = jax.random.split(key, 7)
    scale = lambda fan_in: 1.0 / jnp.sqrt(fan_in)
    w1 = jax.random.uniform(ks[0], (L, L // 2), jnp.float32, -scale(L), scale(L))
    b1 = jax.random.uniform(ks[1], (1, L // 2), jnp.float32, -scale(L), scale(L))
    w2 = jax.random.uniform(ks[2], (L // 2, L // 4), jnp.float32,
                            -scale(L // 2), scale(L // 2))
    b2 = jax.random.uniform(ks[3], (1, L // 4), jnp.float32,
                            -scale(L // 2), scale(L // 2))
    w3 = jax.random.uniform(ks[4], (L // 4, P), jnp.float32,
                            -scale(L // 4), scale(L // 4))
    b3 = jax.random.uniform(ks[5], (1, P), jnp.float32,
                            -scale(L // 4), scale(L // 4))
    wd = jax.random.uniform(ks[6], (P, L), jnp.float32, -scale(P), scale(P))
    return dict(w1=w1, b1=b1, w2=w2, b2=b2, w3=w3, b3=b3, wd=wd)


def reference_forward(y, p):
    h1 = jnp.maximum(y @ p["w1"] + p["b1"], 0.0)
    h2 = jnp.maximum(h1 @ p["w2"] + p["b2"], 0.0)
    logits = h2 @ p["w3"] + p["b3"]
    code = jax.nn.softmax(logits, axis=1)
    return code, code @ p["wd"]


# TODO(synk): the Denoise Conv3d/ConvTranspose3d stack is instantiated in __init__ but
# never called in AutoEncoder.forward, so it has no Pallas equivalent here on purpose.

if __name__ == "__main__":
    # Small shapes consistent with AutoEncoder(L, P): y is a batch of L-band spectra.
    N, L, P = 8, 64, 8

    key = jax.random.PRNGKey(0)
    k_y, k_p = jax.random.split(key)
    y = jax.random.normal(k_y, (N, L), jnp.float32)
    params = init_params(k_p, L, P)

    # plain-JAX fp32 reference
    code_ref, out_ref = reference_forward(y, params)

    # default bf16-MXU / fp32-accumulate path
    code, output = jax.block_until_ready(autoencoder_forward(y, params))
    code_f = code.astype(jnp.float32)
    out_f = output.astype(jnp.float32)

    assert code.shape == (N, P) and output.shape == (N, L)
    # bf16 storage/MXU inputs -> loose tolerances vs. the fp32 reference
    assert jnp.allclose(code_f, code_ref, atol=5e-2, rtol=5e-2)
    assert jnp.allclose(out_f, out_ref, atol=5e-2, rtol=5e-2)
    # exact softmax division: rows sum to 1 up to the bf16 rounding of the store
    assert jnp.allclose(jnp.sum(code_f, axis=1), 1.0, atol=1e-2)

    print("KERNEL_OK")
</pallas_src>

<mosaic_0001>
module attributes {stable_mosaic.version = 11 : i64} {
  func.func @_autoencoder_kernel(%arg0: i32, %arg1: memref<128x64xbf16, #tpu.memory_space<vmem>>, %arg2: memref<64x32xbf16, #tpu.memory_space<vmem>>, %arg3: memref<1x32xf32, #tpu.memory_space<vmem>>, %arg4: memref<32x16xbf16, #tpu.memory_space<vmem>>, %arg5: memref<1x16xf32, #tpu.memory_space<vmem>>, %arg6: memref<16x128xbf16, #tpu.memory_space<vmem>>, %arg7: memref<1x128xf32, #tpu.memory_space<vmem>>, %arg8: memref<128x64xbf16, #tpu.memory_space<vmem>>, %arg9: memref<128x128xbf16, #tpu.memory_space<vmem>>, %arg10: memref<128x64xbf16, #tpu.memory_space<vmem>>) attributes {dimension_semantics = [#tpu.dimension_semantics<parallel>], iteration_bounds = array<i64: 1>, scalar_prefetch = 0 : i64, scratch_operands = 0 : i64, tpu.core_type = #tpu.core_type<tc>, window_params = [{transform_indices = @transform_0, window_bounds = array<i64: 128, 64>}, {pipeline_mode = #tpu.pipeline_mode<synchronous>, transform_indices = @transform_1, window_bounds = array<i64: 64, 32>}, {pipeline_mode = #tpu.pipeline_mode<synchronous>, transform_indices = @transform_2, window_bounds = array<i64: 1, 32>}, {pipeline_mode = #tpu.pipeline_mode<synchronous>, transform_indices = @transform_3, window_bounds = array<i64: 32, 16>}, {pipeline_mode = #tpu.pipeline_mode<synchronous>, transform_indices = @transform_4, window_bounds = array<i64: 1, 16>}, {pipeline_mode = #tpu.pipeline_mode<synchronous>, transform_indices = @transform_5, window_bounds = array<i64: 16, 128>}, {pipeline_mode = #tpu.pipeline_mode<synchronous>, transform_indices = @transform_6, window_bounds = array<i64: 1, 128>}, {pipeline_mode = #tpu.pipeline_mode<synchronous>, transform_indices = @transform_7, window_bounds = array<i64: 128, 64>}, {transform_indices = @transform_8, window_bounds = array<i64: 128, 128>}, {transform_indices = @transform_9, window_bounds = array<i64: 128, 64>}]} {
    %c0 = arith.constant 0 : index
    %c0_0 = arith.constant 0 : index
    %0 = vector.load %arg1[%c0, %c0_0] : memref<128x64xbf16, #tpu.memory_space<vmem>>, vector<128x64xbf16>
    %c0_1 = arith.constant 0 : index
    %c0_2 = arith.constant 0 : index
    %1 = vector.load %arg2[%c0_1, %c0_2] : memref<64x32xbf16, #tpu.memory_space<vmem>>, vector<64x32xbf16>
    %cst = arith.constant dense<0.000000e+00> : vector<128x32xf32>
    %2 = tpu.matmul %0, %1, %cst {dimension_numbers = #tpu.dot_dimension_numbers<[1], [0], [0], [1], [0, 0, 1, 1], [], []>} : vector<128x64xbf16>, vector<64x32xbf16>, vector<128x32xf32> -> vector<128x32xf32>
    %c0_3 = arith.constant 0 : index
    %c0_4 = arith.constant 0 : index
    %3 = vector.load %arg3[%c0_3, %c0_4] : memref<1x32xf32, #tpu.memory_space<vmem>>, vector<1x32xf32>
    %4 = vector.broadcast %3 : vector<1x32xf32> to vector<128x32xf32>
    %5 = arith.addf %2, %4 : vector<128x32xf32>
    %cst_5 = arith.constant 0.000000e+00 : f32
    %6 = vector.broadcast %cst_5 : f32 to vector<128x32xf32>
    %7 = arith.maximumf %5, %6 : vector<128x32xf32>
    %8 = arith.truncf %7 : vector<128x32xf32> to vector<128x32xbf16>
    %c0_6 = arith.constant 0 : index
    %c0_7 = arith.constant 0 : index
    %9 = vector.load %arg4[%c0_6, %c0_7] : memref<32x16xbf16, #tpu.memory_space<vmem>>, vector<32x16xbf16>
    %cst_8 = arith.constant dense<0.000000e+00> : vector<128x16xf32>
    %10 = tpu.matmul %8, %9, %cst_8 {dimension_numbers = #tpu.dot_dimension_numbers<[1], [0], [0], [1], [0, 0, 1, 1], [], []>} : vector<128x32xbf16>, vector<32x16xbf16>, vector<128x16xf32> -> vector<128x16xf32>
    %c0_9 = arith.constant 0 : index
    %c0_10 = arith.constant 0 : index
    %11 = vector.load %arg5[%c0_9, %c0_10] : memref<1x16xf32, #tpu.memory_space<vmem>>, vector<1x16xf32>
    %12 = vector.broadcast %11 : vector<1x16xf32> to vector<128x16xf32>
    %13 = arith.addf %10, %12 : vector<128x16xf32>
    %cst_11 = arith.constant 0.000000e+00 : f32
    %14 = vector.broadcast %cst_11 : f32 to vector<128x16xf32>
    %15 = arith.maximumf %13, %14 : vector<128x16xf32>
    %16 = arith.truncf %15 : vector<128x16xf32> to vector<128x16xbf16>
    %c0_12 = arith.constant 0 : index
    %c0_13 = arith.constant 0 : index
    %17 = vector.load %arg6[%c0_12, %c0_13] : memref<16x128xbf16, #tpu.memory_space<vmem>>, vector<16x128xbf16>
    %cst_14 = arith.constant dense<0.000000e+00> : vector<128x128xf32>
    %18 = tpu.matmul %16, %17, %cst_14 {dimension_numbers = #tpu.dot_dimension_numbers<[1], [0], [0], [1], [0, 0, 1, 1], [], []>} : vector<128x16xbf16>, vector<16x128xbf16>, vector<128x128xf32> -> vector<128x128xf32>
    %c0_15 = arith.constant 0 : index
    %c0_16 = arith.constant 0 : index
    %19 = vector.load %arg7[%c0_15, %c0_16] : memref<1x128xf32, #tpu.memory_space<vmem>>, vector<1x128xf32>
    %20 = vector.broadcast %19 : vector<1x128xf32> to vector<128x128xf32>
    %21 = arith.addf %18, %20 : vector<128x128xf32>
    %cst_17 = arith.constant dense<0xFF800000> : vector<128xf32>
    %22 = vector.multi_reduction <maximumf>, %21, %cst_17 [1] : vector<128x128xf32> to vector<128xf32>
    %23 = vector.shape_cast %22 : vector<128xf32> to vector<128x1xf32>
    %24 = vector.broadcast %23 : vector<128x1xf32> to vector<128x128xf32>
    %25 = arith.subf %21, %24 : vector<128x128xf32>
    %26 = math.exp %25 : vector<128x128xf32>
    %cst_18 = arith.constant dense<0.000000e+00> : vector<128xf32>
    %27 = vector.multi_reduction <add>, %26, %cst_18 [1] : vector<128x128xf32> to vector<128xf32>
    %28 = vector.shape_cast %27 : vector<128xf32> to vector<128x1xf32>
    %29 = vector.broadcast %28 : vector<128x1xf32> to vector<128x128xf32>
    %30 = arith.divf %26, %29 : vector<128x128xf32>
    %31 = arith.truncf %30 : vector<128x128xf32> to vector<128x128xbf16>
    %c0_19 = arith.constant 0 : index
    %c0_20 = arith.constant 0 : index
    %32 = vector.load %arg8[%c0_19, %c0_20] : memref<128x64xbf16, #tpu.memory_space<vmem>>, vector<128x64xbf16>
    %cst_21 = arith.constant dense<0.000000e+00> : vector<128x64xf32>
    %33 = tpu.matmul %31, %32, %cst_21 {dimension_numbers = #tpu.dot_dimension_numbers<[1], [0], [0], [1], [0, 0, 1, 1], [], []>} : vector<128x128xbf16>, vector<128x64xbf16>, vector<128x64xf32> -> vector<128x64xf32>
    %34 = arith.truncf %30 : vector<128x128xf32> to vector<128x128xbf16>
    %c0_22 = arith.constant 0 : index
    %c0_23 = arith.constant 0 : index
    %35 = vector.load %arg9[%c0_22, %c0_23] : memref<128x128xbf16, #tpu.memory_space<vmem>>, vector<128x128xbf16>
    tpu.vector_store %arg9[%c0_22, %c0_23], %34 {strides = array<i32>} : memref<128x128xbf16, #tpu.memory_space<vmem>>, vector<128x128xbf16>,
    %36 = arith.truncf %33 : vector<128x64xf32> to vector<128x64xbf16>
    %c0_24 = arith.constant 0 : index
    %c0_25 = arith.constant 0 : index
    %37 = vector.load %arg10[%c0_24, %c0_25] : memref<128x64xbf16, #tpu.memory_space<vmem>>, vector<128x64xbf16>
    tpu.vector_store %arg10[%c0_24, %c0_25], %36 {strides = array<i32>} : memref<128x64xbf16, #tpu.memory_space<vmem>>, vector<128x64xbf16>,
    return
  }
  func.func @transform_0(%arg0: i32) -> (i32, i32) {
    %c0_i32 = arith.constant 0 : i32
    %c0_i32_0 = arith.constant 0 : i32
    return %arg0, %c0_i32 : i32, i32
  }
  func.func @transform_1(%arg0: i32) -> (i32, i32) {
    %c0_i32 = arith.constant 0 : i32
    %c0_i32_0 = arith.constant 0 : i32
    %c0_i32_1 = arith.constant 0 : i32
    return %c0_i32, %c0_i32_0 : i32, i32
  }
  func.func @transform_2(%arg0: i32) -> (i32, i32) {
    %c0_i32 = arith.constant 0 : i32
    %c0_i32_0 = arith.constant 0 : i32
    %c0_i32_1 = arith.constant 0 : i32
    return %c0_i32, %c0_i32_0 : i32, i32
  }
  func.func @transform_3(%arg0: i32) -> (i32, i32) {
    %c0_i32 = arith.constant 0 : i32
    %c0_i32_0 = arith.constant 0 : i32
    %c0_i32_1 = arith.constant 0 : i32
    return %c0_i32, %c0_i32_0 : i32, i32
  }
  func.func @transform_4(%arg0: i32) -> (i32, i32) {
    %c0_i32 = arith.constant 0 : i32
    %c0_i32_0 = arith.constant 0 : i32
    %c0_i32_1 = arith.constant 0 : i32
    return %c0_i32, %c0_i32_0 : i32, i32
  }
  func.func @transform_5(%arg0: i32) -> (i32, i32) {
    %c0_i32 = arith.constant 0 : i32
    %c0_i32_0 = arith.constant 0 : i32
    %c0_i32_1 = arith.constant 0 : i32
    return %c0_i32, %c0_i32_0 : i32, i32
  }
  func.func @transform_6(%arg0: i32) -> (i32, i32) {
    %c0_i32 = arith.constant 0 : i32
    %c0_i32_0 = arith.constant 0 : i32
    %c0_i32_1 = arith.constant 0 : i32
    return %c0_i32, %c0_i32_0 : i32, i32
  }
  func.func @transform_7(%arg0: i32) -> (i32, i32) {
    %c0_i32 = arith.constant 0 : i32
    %c0_i32_0 = arith.constant 0 : i32
    %c0_i32_1 = arith.constant 0 : i32
    return %c0_i32, %c0_i32_0 : i32, i32
  }
  func.func @transform_8(%arg0: i32) -> (i32, i32) {
    %c0_i32 = arith.constant 0 : i32
    %c0_i32_0 = arith.constant 0 : i32
    return %arg0, %c0_i32 : i32, i32
  }
  func.func @transform_9(%arg0: i32) -> (i32, i32) {
    %c0_i32 = arith.constant 0 : i32
    %c0_i32_0 = arith.constant 0 : i32
    return %arg0, %c0_i32 : i32, i32
  }
}

</mosaic_0001>

<llo_original>
// kernel: tpu_custom_call.1
$region0: #{tpu_custom_call.1}
  #allocation0 [shape = 'u32[]', space=smem, size = 0x4, offset = 0x4, fixed_abs, tag = 'smem constant byte address 0x4 - core index']
  #allocation1 [shape = 'u32[72,128]{1,0:T(1,128)}', space=vmem, size = 0x9000, scoped, tag = 'internal scratch']
  %s0 = inlined_call_operand.vmem [shape: bf16[128,64], index: 0, kind: input, shape index: {}]
  %s1 = inlined_call_operand.vmem [shape: bf16[64,32], index: 1, kind: input, shape index: {}]
  %s2 = inlined_call_operand.vmem [shape: f32[1,32], index: 2, kind: input, shape index: {}]
  %s3 = inlined_call_operand.vmem [shape: bf16[32,16], index: 3, kind: input, shape index: {}]
  %s4 = inlined_call_operand.vmem [shape: f32[1,16], index: 4, kind: input, shape index: {}]
  %s5 = inlined_call_operand.vmem [shape: bf16[16,128], index: 5, kind: input, shape index: {}]
  %s6 = inlined_call_operand.vmem [shape: f32[1,128], index: 6, kind: input, shape index: {}]
  %s7 = inlined_call_operand.vmem [shape: bf16[128,64], index: 7, kind: input, shape index: {}]
  %s8 = inlined_call_operand.hbm [shape: bf16[128,128], index: 8, kind: output, shape index: {0}]
  %s9 = inlined_call_operand.vmem [shape: bf16[128,64], index: 9, kind: output, shape index: {1}]
  %10 = xla_tuple %s8, %s9
  %s11 = sld [smem:[#allocation0]]
  $region50: #{tpu_custom_call.1} parent=0
    _
  %s13 = ssub.s32 1, %s11
  %s14 = scalar_select 0, %s13, %s11
  $region1: #{tpu_custom_call.1} parent=0
    #allocation2 [shape = 'u8[32768]{0}', space=vmem, size = 0x8000, scoped, tag = 'output window, operand 0, single buffered']
    #allocation3 [shape = 's32[1]{0}', space=sflag, size = 0x4, scoped, tag = 'scoped memory for tpu_custom_call.1']
    %15 = vsyncpa [#allocation3], 0
    // Predicated region
    $region2: #{tpu_custom_call.1} parent=1 // pred_check
      _
    $region3: #{tpu_custom_call.1} parent=1 // pred_check_branch
      %17 = sbr.rel (0) target = $region5
    $region4: #{tpu_custom_call.1} parent=1 // pred_region
      _
    $region5: #{tpu_custom_call.1} parent=1 // pred_fallthru
      _
    // Predicated region
    $region6: #{tpu_custom_call.1} parent=1 // pred_check
      _
    $region7: #{tpu_custom_call.1} parent=1 // pred_check_branch
      %19 = sbr.rel (0) target = $region9
    $region8: #{tpu_custom_call.1} parent=1 // pred_region
      _
    $region9: #{tpu_custom_call.1} parent=1 // pred_fallthru
      _
    // Predicated region
    $region10: #{tpu_custom_call.1} parent=1 // pred_check
      _
    $region11: #{tpu_custom_call.1} parent=1 // pred_check_branch
      %21 = sbr.rel (0) target = $region13
    $region12: #{tpu_custom_call.1} parent=1 // pred_region
      _
    $region13: #{tpu_custom_call.1} parent=1 // pred_fallthru
      _
    // Predicated region
    $region14: #{tpu_custom_call.1} parent=1 // pred_check
      _
    $region15: #{tpu_custom_call.1} parent=1 // pred_check_branch
      %23 = sbr.rel (0) target = $region17
    $region16: #{tpu_custom_call.1} parent=1 // pred_region
      _
    $region17: #{tpu_custom_call.1} parent=1 // pred_fallthru
      _
    // Predicated region
    $region18: #{tpu_custom_call.1} parent=1 // pred_check
      _
    $region19: #{tpu_custom_call.1} parent=1 // pred_check_branch
      %25 = sbr.rel (0) target = $region21
    $region20: #{tpu_custom_call.1} parent=1 // pred_region
      _
    $region21: #{tpu_custom_call.1} parent=1 // pred_fallthru
      _
    // Predicated region
    $region22: #{tpu_custom_call.1} parent=1 // pred_check
      _
    $region23: #{tpu_custom_call.1} parent=1 // pred_check_branch
      %27 = sbr.rel (0) target = $region25
    $region24: #{tpu_custom_call.1} parent=1 // pred_region
      _
    $region25: #{tpu_custom_call.1} parent=1 // pred_fallthru
      _
    // Predicated region
    $region26: #{tpu_custom_call.1} parent=1 // pred_check
      _
    $region27: #{tpu_custom_call.1} parent=1 // pred_check_branch
      %29 = sbr.rel (0) target = $region29
    $region28: #{tpu_custom_call.1} parent=1 // pred_region
      _
    $region29: #{tpu_custom_call.1} parent=1 // pred_fallthru
      _
    // Predicated region
    $region30: #{tpu_custom_call.1} parent=1 // pred_check
      _
    $region31: #{tpu_custom_call.1} parent=1 // pred_check_branch
      %31 = sbr.rel (0) target = $region33
    $region32: #{tpu_custom_call.1} parent=1 // pred_region
      _
    $region33: #{tpu_custom_call.1} parent=1 // pred_fallthru
      _
    %v33 = vld [vmem:[%s0] sm:$0xf]
    %v34 = vld [vmem:[%s0 + $0x4] sm:$0xf]
    %v35 = vld [vmem:[%s0 + $0x8] sm:$0xf]
    %v36 = vld [vmem:[%s0 + $0xc] sm:$0xf]
    %v37 = vld [vmem:[%s0 + $0x10] sm:$0xf]
    %v38 = vld [vmem:[%s0 + $0x14] sm:$0xf]
    %v39 = vld [vmem:[%s0 + $0x18] sm:$0xf]
    %v40 = vld [vmem:[%s0 + $0x1c] sm:$0xf]
    %v41 = vld [vmem:[%s0 + $0x20] sm:$0xf]
    %v42 = vld [vmem:[%s0 + $0x24] sm:$0xf]
    %v43 = vld [vmem:[%s0 + $0x28] sm:$0xf]
    %v44 = vld [vmem:[%s0 + $0x2c] sm:$0xf]
    %v45 = vld [vmem:[%s0 + $0x30] sm:$0xf]
    %v46 = vld [vmem:[%s0 + $0x34] sm:$0xf]
    %v47 = vld [vmem:[%s0 + $0x38] sm:$0xf]
    %v48 = vld [vmem:[%s0 + $0x3c] sm:$0xf]
    %v49 = vld [vmem:[%s1] sm:$0xf]
    %v50 = vld [vmem:[%s1 + $0x4] sm:$0xf]
    %v51 = vld [vmem:[%s1 + $0x8] sm:$0xf]
    %v52 = vld [vmem:[%s1 + $0xc] sm:$0xf]
    %v53 = vld [vmem:[%s1 + $0x10] sm:$0xf]
    %v54 = vld [vmem:[%s1 + $0x14] sm:$0xf]
    %v55 = vld [vmem:[%s1 + $0x18] sm:$0xf]
    %v56 = vld [vmem:[%s1 + $0x1c] sm:$0xf]
    %v57 = vld [vmem:[%s2] sm:$0x1]
    %v59 = vperm.slane %v57, 0
    %v77 = vunpack.c.l.b16 %v33
    %v78 = vunpack.c.l.b16 %v34
    %v79 = vunpack.c.l.b16 %v35
    %v80 = vunpack.c.l.b16 %v36
    %v81 = vunpack.c.l.b16 %v37
    %v82 = vunpack.c.l.b16 %v38
    %v83 = vunpack.c.l.b16 %v39
    %v84 = vunpack.c.l.b16 %v40
    %v85 = vunpack.c.l.b16 %v41
    %v86 = vunpack.c.l.b16 %v42
    %v87 = vunpack.c.l.b16 %v43
    %v88 = vunpack.c.l.b16 %v44
    %v89 = vunpack.c.l.b16 %v45
    %v90 = vunpack.c.l.b16 %v46
    %v91 = vunpack.c.l.b16 %v47
    %v92 = vunpack.c.l.b16 %v48
    %v93 = vpack.c.b16 %v78, %v77
    %v94 = vpack.c.b16 %v80, %v79
    %v95 = vpack.c.b16 %v82, %v81
    %v96 = vpack.c.b16 %v84, %v83
    %v97 = vpack.c.b16 %v86, %v85
    %v98 = vpack.c.b16 %v88, %v87
    %v99 = vpack.c.b16 %v90, %v89
    %v100 = vpack.c.b16 %v92, %v91
    %v109 = vunpack.c.l.b16 %v49
    %v110 = vunpack.c.l.b16 %v50
    %v111 = vunpack.c.l.b16 %v51
    %v112 = vunpack.c.l.b16 %v52
    %v113 = vunpack.c.l.b16 %v53
    %v114 = vunpack.c.l.b16 %v54
    %v115 = vunpack.c.l.b16 %v55
    %v116 = vunpack.c.l.b16 %v56
    %v117 = vpack.c.b16 %v110, %v109
    %v118 = vpack.c.b16 %v112, %v111
    %v119 = vpack.c.b16 %v114, %v113
    %v120 = vpack.c.b16 %v116, %v115
    %vm125 = vcmask 523264
    %v127 = vsel %vm125, %v93, 0
    %v130 = vsel %vm125, %v94, 0
    %v133 = vsel %vm125, %v95, 0
    %v136 = vsel %vm125, %v96, 0
    %v139 = vsel %vm125, %v97, 0
    %v142 = vsel %vm125, %v98, 0
    %v145 = vsel %vm125, %v99, 0
    %v148 = vsel %vm125, %v100, 0
    %150 = vmatpush.bf16.msra.mxu0 0
    %151 = vmatpush.bf16.msra.mxu0 0
    %152 = vmatpush.bf16.msra.mxu0 0
    %153 = vmatpush.bf16.msra.mxu0 0
    %154 = vmatpush.bf16.msra.mxu0 %v120
    %155 = vmatpush.bf16.msra.mxu0 %v119
    %156 = vmatpush.bf16.msra.mxu0 %v118
    %157 = vmatpush.bf16.msra.mxu0 %v117
    %158 = vmatmul.bf16.gmra.mxu0 %v127
    %v159 = vpop.f32.mrf.mxu0
    %v160 = vadd.f32 %v59, %v159
    %v161 = vpop.f32.mrf.mxu0
    %v162 = vadd.f32 %v59, %v161
    %163 = vmatmul.bf16.gmra.mxu0 %v130
    %v164 = vpop.f32.mrf.mxu0
    %v165 = vadd.f32 %v59, %v164
    %v166 = vpop.f32.mrf.mxu0
    %v167 = vadd.f32 %v59, %v166
    %168 = vmatmul.bf16.gmra.mxu0 %v133
    %v169 = vpop.f32.mrf.mxu0
    %v170 = vadd.f32 %v59, %v169
    %v171 = vpop.f32.mrf.mxu0
    %v172 = vadd.f32 %v59, %v171
    %173 = vmatmul.bf16.gmra.mxu0 %v136
    %v174 = vpop.f32.mrf.mxu0
    %v175 = vadd.f32 %v59, %v174
    %v176 = vpop.f32.mrf.mxu0
    %v177 = vadd.f32 %v59, %v176
    %178 = vmatmul.bf16.gmra.mxu0 %v139
    %v179 = vpop.f32.mrf.mxu0
    %v180 = vadd.f32 %v59, %v179
    %v181 = vpop.f32.mrf.mxu0
    %v182 = vadd.f32 %v59, %v181
    %183 = vmatmul.bf16.gmra.mxu0 %v142
    %v184 = vpop.f32.mrf.mxu0
    %v185 = vadd.f32 %v59, %v184
    %v186 = vpop.f32.mrf.mxu0
    %v187 = vadd.f32 %v59, %v186
    %188 = vmatmul.bf16.gmra.mxu0 %v145
    %v189 = vpop.f32.mrf.mxu0
    %v190 = vadd.f32 %v59, %v189
    %v191 = vpop.f32.mrf.mxu0
    %v192 = vadd.f32 %v59, %v191
    %193 = vmatmul.bf16.gmra.mxu0 %v148
    %v194 = vpop.f32.mrf.mxu0
    %v195 = vadd.f32 %v59, %v194
    %v196 = vpop.f32.mrf.mxu0
    %v197 = vadd.f32 %v59, %v196
    %198 = vdwg.mxu0
    %v199 = vmax.f32 %v160, 0.0
    %v200 = vmax.f32 %v162, 0.0
    %v201 = vmax.f32 %v165, 0.0
    %v202 = vmax.f32 %v167, 0.0
    %v203 = vmax.f32 %v170, 0.0
    %v204 = vmax.f32 %v172, 0.0
    %v205 = vmax.f32 %v175, 0.0
    %v206 = vmax.f32 %v177, 0.0
    %v207 = vmax.f32 %v180, 0.0
    %v208 = vmax.f32 %v182, 0.0
    %v209 = vmax.f32 %v185, 0.0
    %v210 = vmax.f32 %v187, 0.0
    %v211 = vmax.f32 %v190, 0.0
    %v212 = vmax.f32 %v192, 0.0
    %v213 = vmax.f32 %v195, 0.0
    %v214 = vmax.f32 %v197, 0.0
    %v215 = vpack.c.bf16 %v200, %v199
    %v216 = vpack.c.bf16 %v202, %v201
    %v217 = vpack.c.bf16 %v204, %v203
    %v218 = vpack.c.bf16 %v206, %v205
    %v219 = vpack.c.bf16 %v208, %v207
    %v220 = vpack.c.bf16 %v210, %v209
    %v221 = vpack.c.bf16 %v212, %v211
    %v222 = vpack.c.bf16 %v214, %v213
    %v223 = vld [vmem:[%s3] sm:$0xf]
    %v224 = vld [vmem:[%s3 + $0x4] sm:$0xf]
    %v225 = vld [vmem:[%s3 + $0x8] sm:$0xf]
    %v226 = vld [vmem:[%s3 + $0xc] sm:$0xf]
    %v227 = vld [vmem:[%s4] sm:$0x1]
    %v229 = vperm.slane %v227, 0
    %v235 = vunpack.c.l.b16 %v223
    %v236 = vunpack.c.l.b16 %v224
    %v237 = vunpack.c.l.b16 %v225
    %v238 = vunpack.c.l.b16 %v226
    %v239 = vpack.c.b16 %v236, %v235
    %v240 = vpack.c.b16 %v238, %v237
    %vm243 = vcmask 261120
    %v245 = vsel %vm243, %v215, 0
    %v248 = vsel %vm243, %v216, 0
    %v251 = vsel %vm243, %v217, 0
    %v254 = vsel %vm243, %v218, 0
    %v257 = vsel %vm243, %v219, 0
    %v260 = vsel %vm243, %v220, 0
    %v263 = vsel %vm243, %v221, 0
    %v266 = vsel %vm243, %v222, 0
    %268 = vmatpush.bf16.msra.mxu0 0
    %269 = vmatpush.bf16.msra.mxu0 0
    %270 = vmatpush.bf16.msra.mxu0 0
    %271 = vmatpush.bf16.msra.mxu0 0
    %272 = vmatpush.bf16.msra.mxu0 0
    %273 = vmatpush.bf16.msra.mxu0 0
    %274 = vmatpush.bf16.msra.mxu0 %v240
    %275 = vmatpush.bf16.msra.mxu0 %v239
    %276 = vmatmul.bf16.gmra.mxu0 %v245
    %v277 = vpop.f32.mrf.mxu0
    %v278 = vadd.f32 %v229, %v277
    %v279 = vpop.f32.mrf.mxu0
    %v280 = vadd.f32 %v229, %v279
    %281 = vmatmul.bf16.gmra.mxu0 %v248
    %v282 = vpop.f32.mrf.mxu0
    %v283 = vadd.f32 %v229, %v282
    %v284 = vpop.f32.mrf.mxu0
    %v285 = vadd.f32 %v229, %v284
    %286 = vmatmul.bf16.gmra.mxu0 %v251
    %v287 = vpop.f32.mrf.mxu0
    %v288 = vadd.f32 %v229, %v287
    %v289 = vpop.f32.mrf.mxu0
    %v290 = vadd.f32 %v229, %v289
    %291 = vmatmul.bf16.gmra.mxu0 %v254
    %v292 = vpop.f32.mrf.mxu0
    %v293 = vadd.f32 %v229, %v292
    %v294 = vpop.f32.mrf.mxu0
    %v295 = vadd.f32 %v229, %v294
    %296 = vmatmul.bf16.gmra.mxu0 %v257
    %v297 = vpop.f32.mrf.mxu0
    %v298 = vadd.f32 %v229, %v297
    %v299 = vpop.f32.mrf.mxu0
    %v300 = vadd.f32 %v229, %v299
    %301 = vmatmul.bf16.gmra.mxu0 %v260
    %v302 = vpop.f32.mrf.mxu0
    %v303 = vadd.f32 %v229, %v302
    %v304 = vpop.f32.mrf.mxu0
    %v305 = vadd.f32 %v229, %v304
    %306 = vmatmul.bf16.gmra.mxu0 %v263
    %v307 = vpop.f32.mrf.mxu0
    %v308 = vadd.f32 %v229, %v307
    %v309 = vpop.f32.mrf.mxu0
    %v310 = vadd.f32 %v229, %v309
    %311 = vmatmul.bf16.gmra.mxu0 %v266
    %v312 = vpop.f32.mrf.mxu0
    %v313 = vadd.f32 %v229, %v312
    %v314 = vpop.f32.mrf.mxu0
    %v315 = vadd.f32 %v229, %v314
    %316 = vdwg.mxu0
    %v317 = vmax.f32 %v278, 0.0
    %v318 = vmax.f32 %v280, 0.0
    %v319 = vmax.f32 %v283, 0.0
    %v320 = vmax.f32 %v285, 0.0
    %v321 = vmax.f32 %v288, 0.0
    %v322 = vmax.f32 %v290, 0.0
    %v323 = vmax.f32 %v293, 0.0
    %v324 = vmax.f32 %v295, 0.0
    %v325 = vmax.f32 %v298, 0.0
    %v326 = vmax.f32 %v300, 0.0
    %v327 = vmax.f32 %v303, 0.0
    %v328 = vmax.f32 %v305, 0.0
    %v329 = vmax.f32 %v308, 0.0
    %v330 = vmax.f32 %v310, 0.0
    %v331 = vmax.f32 %v313, 0.0
    %v332 = vmax.f32 %v315, 0.0
    %v333 = vpack.c.bf16 %v318, %v317
    %v334 = vpack.c.bf16 %v320, %v319
    %v335 = vpack.c.bf16 %v322, %v321
    %v336 = vpack.c.bf16 %v324, %v323
    %v337 = vpack.c.bf16 %v326, %v325
    %v338 = vpack.c.bf16 %v328, %v327
    %v339 = vpack.c.bf16 %v330, %v329
    %v340 = vpack.c.bf16 %v332, %v331
    %v341 = vld [vmem:[%s5] sm:$0xf]
    %v342 = vld [vmem:[%s5 + $0x4] sm:$0xf]
    %v343 = vld [vmem:[%s6] sm:$0x1]
    %v345 = vperm.slane %v343, 0
    %v349 = vunpack.c.l.b16 %v341
    %v350 = vunpack.c.l.b16 %v342
    %v351 = vpack.c.b16 %v350, %v349
    %vm353 = vcmask 130048
    %v355 = vsel %vm353, %v333, 0
    %v358 = vsel %vm353, %v334, 0
    %v361 = vsel %vm353, %v335, 0
    %v364 = vsel %vm353, %v336, 0
    %v367 = vsel %vm353, %v337, 0
    %v370 = vsel %vm353, %v338, 0
    %v373 = vsel %vm353, %v339, 0
    %v376 = vsel %vm353, %v340, 0
    %378 = vmatpush.bf16.msra.mxu0 0
    %379 = vmatpush.bf16.msra.mxu0 0
    %380 = vmatpush.bf16.msra.mxu0 0
    %381 = vmatpush.bf16.msra.mxu0 0
    %382 = vmatpush.bf16.msra.mxu0 0
    %383 = vmatpush.bf16.msra.mxu0 0
    %384 = vmatpush.bf16.msra.mxu0 0
    %385 = vmatpush.bf16.msra.mxu0 %v351
    %386 = vmatmul.bf16.gmra.mxu0 %v355
    %v387 = vpop.f32.mrf.mxu0
    %v388 = vadd.f32 %v345, %v387
    %v389 = vpop.f32.mrf.mxu0
    %v390 = vadd.f32 %v345, %v389
    %391 = vmatmul.bf16.gmra.mxu0 %v358
    %v392 = vpop.f32.mrf.mxu0
    %v393 = vadd.f32 %v345, %v392
    %v394 = vpop.f32.mrf.mxu0
    %v395 = vadd.f32 %v345, %v394
    %396 = vmatmul.bf16.gmra.mxu0 %v361
    %v397 = vpop.f32.mrf.mxu0
    %v398 = vadd.f32 %v345, %v397
    %v399 = vpop.f32.mrf.mxu0
    %v400 = vadd.f32 %v345, %v399
    %401 = vmatmul.bf16.gmra.mxu0 %v364
    %v402 = vpop.f32.mrf.mxu0
    %v403 = vadd.f32 %v345, %v402
    %v404 = vpop.f32.mrf.mxu0
    %v405 = vadd.f32 %v345, %v404
    %406 = vmatmul.bf16.gmra.mxu0 %v367
    %v407 = vpop.f32.mrf.mxu0
    %v408 = vadd.f32 %v345, %v407
    %v409 = vpop.f32.mrf.mxu0
    %v410 = vadd.f32 %v345, %v409
    %411 = vmatmul.bf16.gmra.mxu0 %v370
    %v412 = vpop.f32.mrf.mxu0
    %v413 = vadd.f32 %v345, %v412
    %v414 = vpop.f32.mrf.mxu0
    %v415 = vadd.f32 %v345, %v414
    %416 = vmatmul.bf16.gmra.mxu0 %v373
    %v417 = vpop.f32.mrf.mxu0
    %v418 = vadd.f32 %v345, %v417
    %v419 = vpop.f32.mrf.mxu0
    %v420 = vadd.f32 %v345, %v419
    %421 = vmatmul.bf16.gmra.mxu0 %v376
    %v422 = vpop.f32.mrf.mxu0
    %v423 = vadd.f32 %v345, %v422
    %v424 = vpop.f32.mrf.mxu0
    %v425 = vadd.f32 %v345, %v424
    %426 = vdwg.mxu0
    %427 = vmax.xlane.f32.xlu0 %v388
    %v428 = vpop.xlane.xlu0 %427
    %429 = vmax.xlane.f32.xlu0 %v390
    %v430 = vpop.xlane.xlu0 %429
    %431 = vmax.xlane.f32.xlu0 %v393
    %v432 = vpop.xlane.xlu0 %431
    %433 = vmax.xlane.f32.xlu0 %v395
    %v434 = vpop.xlane.xlu0 %433
    %435 = vmax.xlane.f32.xlu0 %v398
    %v436 = vpop.xlane.xlu0 %435
    %437 = vmax.xlane.f32.xlu0 %v400
    %v438 = vpop.xlane.xlu0 %437
    %439 = vmax.xlane.f32.xlu0 %v403
    %v440 = vpop.xlane.xlu0 %439
    %441 = vmax.xlane.f32.xlu0 %v405
    %v442 = vpop.xlane.xlu0 %441
    %443 = vmax.xlane.f32.xlu0 %v408
    %v444 = vpop.xlane.xlu0 %443
    %445 = vmax.xlane.f32.xlu0 %v410
    %v446 = vpop.xlane.xlu0 %445
    %447 = vmax.xlane.f32.xlu0 %v413
    %v448 = vpop.xlane.xlu0 %447
    %449 = vmax.xlane.f32.xlu0 %v415
    %v450 = vpop.xlane.xlu0 %449
    %451 = vmax.xlane.f32.xlu0 %v418
    %v452 = vpop.xlane.xlu0 %451
    %453 = vmax.xlane.f32.xlu0 %v420
    %v454 = vpop.xlane.xlu0 %453
    %455 = vmax.xlane.f32.xlu0 %v423
    %v456 = vpop.xlane.xlu0 %455
    %457 = vmax.xlane.f32.xlu0 %v425
    %v458 = vpop.xlane.xlu0 %457
    %v459 = vsub.f32 %v388, %v428
    %v460 = vsub.f32 %v390, %v430
    %v461 = vsub.f32 %v393, %v432
    %v462 = vsub.f32 %v395, %v434
    %v463 = vsub.f32 %v398, %v436
    %v464 = vsub.f32 %v400, %v438
    %v465 = vsub.f32 %v403, %v440
    %v466 = vsub.f32 %v405, %v442
    %v467 = vsub.f32 %v408, %v444
    %v468 = vsub.f32 %v410, %v446
    %v469 = vsub.f32 %v413, %v448
    %v470 = vsub.f32 %v415, %v450
    %v471 = vsub.f32 %v418, %v452
    %v472 = vsub.f32 %v420, %v454
    %v473 = vsub.f32 %v423, %v456
    %v474 = vsub.f32 %v425, %v458
    %v475 = vmul.f32 %v459, 1.442695
    %v476 = vpow.pop %v475
    %v477 = vmul.f32 %v460, 1.442695
    %v478 = vpow.pop %v477
    %v479 = vmul.f32 %v461, 1.442695
    %v480 = vpow.pop %v479
    %v481 = vmul.f32 %v462, 1.442695
    %v482 = vpow.pop %v481
    %v483 = vmul.f32 %v463, 1.442695
    %v484 = vpow.pop %v483
    %v485 = vmul.f32 %v464, 1.442695
    %v486 = vpow.pop %v485
    %v487 = vmul.f32 %v465, 1.442695
    %v488 = vpow.pop %v487
    %v489 = vmul.f32 %v466, 1.442695
    %v490 = vpow.pop %v489
    %v491 = vmul.f32 %v467, 1.442695
    %v492 = vpow.pop %v491
    %v493 = vmul.f32 %v468, 1.442695
    %v494 = vpow.pop %v493
    %v495 = vmul.f32 %v469, 1.442695
    %v496 = vpow.pop %v495
    %v497 = vmul.f32 %v470, 1.442695
    %v498 = vpow.pop %v497
    %v499 = vmul.f32 %v471, 1.442695
    %v500 = vpow.pop %v499
    %v501 = vmul.f32 %v472, 1.442695
    %v502 = vpow.pop %v501
    %v503 = vmul.f32 %v473, 1.442695
    %v504 = vpow.pop %v503
    %v505 = vmul.f32 %v474, 1.442695
    %v506 = vpow.pop %v505
    %507 = vadd.xlane.f32.xlu0 %v476
    %v508 = vpop.xlane.xlu0 %507
    %509 = vadd.xlane.f32.xlu0 %v478
    %v510 = vpop.xlane.xlu0 %509
    %511 = vadd.xlane.f32.xlu0 %v480
    %v512 = vpop.xlane.xlu0 %511
    %513 = vadd.xlane.f32.xlu0 %v482
    %v514 = vpop.xlane.xlu0 %513
    %515 = vadd.xlane.f32.xlu0 %v484
    %v516 = vpop.xlane.xlu0 %515
    %517 = vadd.xlane.f32.xlu0 %v486
    %v518 = vpop.xlane.xlu0 %517
    %519 = vadd.xlane.f32.xlu0 %v488
    %v520 = vpop.xlane.xlu0 %519
    %521 = vadd.xlane.f32.xlu0 %v490
    %v522 = vpop.xlane.xlu0 %521
    %523 = vadd.xlane.f32.xlu0 %v492
    %v524 = vpop.xlane.xlu0 %523
    %525 = vadd.xlane.f32.xlu0 %v494
    %v526 = vpop.xlane.xlu0 %525
    %527 = vadd.xlane.f32.xlu0 %v496
    %v528 = vpop.xlane.xlu0 %527
    %529 = vadd.xlane.f32.xlu0 %v498
    %v530 = vpop.xlane.xlu0 %529
    %531 = vadd.xlane.f32.xlu0 %v500
    %v532 = vpop.xlane.xlu0 %531
    %533 = vadd.xlane.f32.xlu0 %v502
    %v534 = vpop.xlane.xlu0 %533
    %535 = vadd.xlane.f32.xlu0 %v504
    %v536 = vpop.xlane.xlu0 %535
    %537 = vadd.xlane.f32.xlu0 %v506
    %v538 = vpop.xlane.xlu0 %537
    %v539 = vrcp.pop %v508
    %v540 = vmul.f32 %v508, %v539
    %v541 = vsub.f32 1.0, %v540
    %v542 = vmul.f32 %v539, %v541
    %v543 = vadd.f32 %v539, %v542
    %vm544 = vweird.f32 %v508
    %vm545 = vweird.f32 %v539
    %vm546 = vmor %vm544, %vm545
    %v547 = vsel %vm546, %v539, %v543
    %v548 = vand.u32 2147483647, %v508
    %vm549 = vcmp.eq.f32.partialorder %v548, 8.507059e+37
    %v550 = vand.u32 %v508, 2147483648
    %v551 = vor.u32 1.1754944e-38, %v550
    %v552 = vsel %vm549, %v551, %v547
    %v553 = vmul.f32 %v476, %v552
    %v554 = vrcp.pop %v510
    %v555 = vmul.f32 %v510, %v554
    %v556 = vsub.f32 1.0, %v555
    %v557 = vmul.f32 %v554, %v556
    %v558 = vadd.f32 %v554, %v557
    %vm559 = vweird.f32 %v510
    %vm560 = vweird.f32 %v554
    %vm561 = vmor %vm559, %vm560
    %v562 = vsel %vm561, %v554, %v558
    %v563 = vand.u32 2147483647, %v510
    %vm564 = vcmp.eq.f32.partialorder %v563, 8.507059e+37
    %v565 = vand.u32 %v510, 2147483648
    %v566 = vor.u32 1.1754944e-38, %v565
    %v567 = vsel %vm564, %v566, %v562
    %v568 = vmul.f32 %v478, %v567
    %v569 = vrcp.pop %v512
    %v570 = vmul.f32 %v512, %v569
    %v571 = vsub.f32 1.0, %v570
    %v572 = vmul.f32 %v569, %v571
    %v573 = vadd.f32 %v569, %v572
    %vm574 = vweird.f32 %v512
    %vm575 = vweird.f32 %v569
    %vm576 = vmor %vm574, %vm575
    %v577 = vsel %vm576, %v569, %v573
    %v578 = vand.u32 2147483647, %v512
    %vm579 = vcmp.eq.f32.partialorder %v578, 8.507059e+37
    %v580 = vand.u32 %v512, 2147483648
    %v581 = vor.u32 1.1754944e-38, %v580
    %v582 = vsel %vm579, %v581, %v577
    %v583 = vmul.f32 %v480, %v582
    %v584 = vrcp.pop %v514
    %v585 = vmul.f32 %v514, %v584
    %v586 = vsub.f32 1.0, %v585
    %v587 = vmul.f32 %v584, %v586
    %v588 = vadd.f32 %v584, %v587
    %vm589 = vweird.f32 %v514
    %vm590 = vweird.f32 %v584
    %vm591 = vmor %vm589, %vm590
    %v592 = vsel %vm591, %v584, %v588
    %v593 = vand.u32 2147483647, %v514
    %vm594 = vcmp.eq.f32.partialorder %v593, 8.507059e+37
    %v595 = vand.u32 %v514, 2147483648
    %v596 = vor.u32 1.1754944e-38, %v595
    %v597 = vsel %vm594, %v596, %v592
    %v598 = vmul.f32 %v482, %v597
    %v599 = vrcp.pop %v516
    %v600 = vmul.f32 %v516, %v599
    %v601 = vsub.f32 1.0, %v600
    %v602 = vmul.f32 %v599, %v601
    %v603 = vadd.f32 %v599, %v602
    %vm604 = vweird.f32 %v516
    %vm605 = vweird.f32 %v599
    %vm606 = vmor %vm604, %vm605
    %v607 = vsel %vm606, %v599, %v603
    %v608 = vand.u32 2147483647, %v516
    %vm609 = vcmp.eq.f32.partialorder %v608, 8.507059e+37
    %v610 = vand.u32 %v516, 2147483648
    %v611 = vor.u32 1.1754944e-38, %v610
    %v612 = vsel %vm609, %v611, %v607
    %v613 = vmul.f32 %v484, %v612
    %v614 = vrcp.pop %v518
    %v615 = vmul.f32 %v518, %v614
    %v616 = vsub.f32 1.0, %v615
    %v617 = vmul.f32 %v614, %v616
    %v618 = vadd.f32 %v614, %v617
    %vm619 = vweird.f32 %v518
    %vm620 = vweird.f32 %v614
    %vm621 = vmor %vm619, %vm620
    %v622 = vsel %vm621, %v614, %v618
    %v623 = vand.u32 2147483647, %v518
    %vm624 = vcmp.eq.f32.partialorder %v623, 8.507059e+37
    %v625 = vand.u32 %v518, 2147483648
    %v626 = vor.u32 1.1754944e-38, %v625
    %v627 = vsel %vm624, %v626, %v622
    %v628 = vmul.f32 %v486, %v627
    %v629 = vrcp.pop %v520
    %v630 = vmul.f32 %v520, %v629
    %v631 = vsub.f32 1.0, %v630
    %v632 = vmul.f32 %v629, %v631
    %v633 = vadd.f32 %v629, %v632
    %vm634 = vweird.f32 %v520
    %vm635 = vweird.f32 %v629
    %vm636 = vmor %vm634, %vm635
    %v637 = vsel %vm636, %v629, %v633
    %v638 = vand.u32 2147483647, %v520
    %vm639 = vcmp.eq.f32.partialorder %v638, 8.507059e+37
    %v640 = vand.u32 %v520, 2147483648
    %v641 = vor.u32 1.1754944e-38, %v640
    %v642 = vsel %vm639, %v641, %v637
    %v643 = vmul.f32 %v488, %v642
    %v644 = vrcp.pop %v522
    %v645 = vmul.f32 %v522, %v644
    %v646 = vsub.f32 1.0, %v645
    %v647 = vmul.f32 %v644, %v646
    %v648 = vadd.f32 %v644, %v647
    %vm649 = vweird.f32 %v522
    %vm650 = vweird.f32 %v644
    %vm651 = vmor %vm649, %vm650
    %v652 = vsel %vm651, %v644, %v648
    %v653 = vand.u32 2147483647, %v522
    %vm654 = vcmp.eq.f32.partialorder %v653, 8.507059e+37
    %v655 = vand.u32 %v522, 2147483648
    %v656 = vor.u32 1.1754944e-38, %v655
    %v657 = vsel %vm654, %v656, %v652
    %v658 = vmul.f32 %v490, %v657
    %v659 = vrcp.pop %v524
    %v660 = vmul.f32 %v524, %v659
    %v661 = vsub.f32 1.0, %v660
    %v662 = vmul.f32 %v659, %v661
    %v663 = vadd.f32 %v659, %v662
    %vm664 = vweird.f32 %v524
    %vm665 = vweird.f32 %v659
    %vm666 = vmor %vm664, %vm665
    %v667 = vsel %vm666, %v659, %v663
    %v668 = vand.u32 2147483647, %v524
    %vm669 = vcmp.eq.f32.partialorder %v668, 8.507059e+37
    %v670 = vand.u32 %v524, 2147483648
    %v671 = vor.u32 1.1754944e-38, %v670
    %v672 = vsel %vm669, %v671, %v667
    %v673 = vmul.f32 %v492, %v672
    %v674 = vrcp.pop %v526
    %v675 = vmul.f32 %v526, %v674
    %v676 = vsub.f32 1.0, %v675
    %v677 = vmul.f32 %v674, %v676
    %v678 = vadd.f32 %v674, %v677
    %vm679 = vweird.f32 %v526
    %vm680 = vweird.f32 %v674
    %vm681 = vmor %vm679, %vm680
    %v682 = vsel %vm681, %v674, %v678
    %v683 = vand.u32 2147483647, %v526
    %vm684 = vcmp.eq.f32.partialorder %v683, 8.507059e+37
    %v685 = vand.u32 %v526, 2147483648
    %v686 = vor.u32 1.1754944e-38, %v685
    %v687 = vsel %vm684, %v686, %v682
    %v688 = vmul.f32 %v494, %v687
    %v689 = vrcp.pop %v528
    %v690 = vmul.f32 %v528, %v689
    %v691 = vsub.f32 1.0, %v690
    %v692 = vmul.f32 %v689, %v691
    %v693 = vadd.f32 %v689, %v692
    %vm694 = vweird.f32 %v528
    %vm695 = vweird.f32 %v689
    %vm696 = vmor %vm694, %vm695
    %v697 = vsel %vm696, %v689, %v693
    %v698 = vand.u32 2147483647, %v528
    %vm699 = vcmp.eq.f32.partialorder %v698, 8.507059e+37
    %v700 = vand.u32 %v528, 2147483648
    %v701 = vor.u32 1.1754944e-38, %v700
    %v702 = vsel %vm699, %v701, %v697
    %v703 = vmul.f32 %v496, %v702
    %v704 = vrcp.pop %v530
    %v705 = vmul.f32 %v530, %v704
    %v706 = vsub.f32 1.0, %v705
    %v707 = vmul.f32 %v704, %v706
    %v708 = vadd.f32 %v704, %v707
    %vm709 = vweird.f32 %v530
    %vm710 = vweird.f32 %v704
    %vm711 = vmor %vm709, %vm710
    %v712 = vsel %vm711, %v704, %v708
    %v713 = vand.u32 2147483647, %v530
    %vm714 = vcmp.eq.f32.partialorder %v713, 8.507059e+37
    %v715 = vand.u32 %v530, 2147483648
    %v716 = vor.u32 1.1754944e-38, %v715
    %v717 = vsel %vm714, %v716, %v712
    %v718 = vmul.f32 %v498, %v717
    %v719 = vrcp.pop %v532
    %v720 = vmul.f32 %v532, %v719
    %v721 = vsub.f32 1.0, %v720
    %v722 = vmul.f32 %v719, %v721
    %v723 = vadd.f32 %v719, %v722
    %vm724 = vweird.f32 %v532
    %vm725 = vweird.f32 %v719
    %vm726 = vmor %vm724, %vm725
    %v727 = vsel %vm726, %v719, %v723
    %v728 = vand.u32 2147483647, %v532
    %vm729 = vcmp.eq.f32.partialorder %v728, 8.507059e+37
    %v730 = vand.u32 %v532, 2147483648
    %v731 = vor.u32 1.1754944e-38, %v730
    %v732 = vsel %vm729, %v731, %v727
    %v733 = vmul.f32 %v500, %v732
    %v734 = vrcp.pop %v534
    %v735 = vmul.f32 %v534, %v734
    %v736 = vsub.f32 1.0, %v735
    %v737 = vmul.f32 %v734, %v736
    %v738 = vadd.f32 %v734, %v737
    %vm739 = vweird.f32 %v534
    %vm740 = vweird.f32 %v734
    %vm741 = vmor %vm739, %vm740
    %v742 = vsel %vm741, %v734, %v738
    %v743 = vand.u32 2147483647, %v534
    %vm744 = vcmp.eq.f32.partialorder %v743, 8.507059e+37
    %v745 = vand.u32 %v534, 2147483648
    %v746 = vor.u32 1.1754944e-38, %v745
    %v747 = vsel %vm744, %v746, %v742
    %v748 = vmul.f32 %v502, %v747
    %v749 = vrcp.pop %v536
    %v750 = vmul.f32 %v536, %v749
    %v751 = vsub.f32 1.0, %v750
    %v752 = vmul.f32 %v749, %v751
    %v753 = vadd.f32 %v749, %v752
    %vm754 = vweird.f32 %v536
    %vm755 = vweird.f32 %v749
    %vm756 = vmor %vm754, %vm755
    %v757 = vsel %vm756, %v749, %v753
    %v758 = vand.u32 2147483647, %v536
    %vm759 = vcmp.eq.f32.partialorder %v758, 8.507059e+37
    %v760 = vand.u32 %v536, 2147483648
    %v761 = vor.u32 1.1754944e-38, %v760
    %v762 = vsel %vm759, %v761, %v757
    %v763 = vmul.f32 %v504, %v762
    %v764 = vrcp.pop %v538
    %v765 = vmul.f32 %v538, %v764
    %v766 = vsub.f32 1.0, %v765
    %v767 = vmul.f32 %v764, %v766
    %v768 = vadd.f32 %v764, %v767
    %vm769 = vweird.f32 %v538
    %vm770 = vweird.f32 %v764
    %vm771 = vmor %vm769, %vm770
    %v772 = vsel %vm771, %v764, %v768
    %v773 = vand.u32 2147483647, %v538
    %vm774 = vcmp.eq.f32.partialorder %v773, 8.507059e+37
    %v775 = vand.u32 %v538, 2147483648
    %v776 = vor.u32 1.1754944e-38, %v775
    %v777 = vsel %vm774, %v776, %v772
    %v778 = vmul.f32 %v506, %v777
    %v779 = vpack.c.bf16 %v553, %v553
    %v780 = vpack.c.bf16 %v568, %v568
    %v781 = vpack.c.bf16 %v583, %v583
    %v782 = vpack.c.bf16 %v598, %v598
    %v783 = vpack.c.bf16 %v613, %v613
    %v784 = vpack.c.bf16 %v628, %v628
    %v785 = vpack.c.bf16 %v643, %v643
    %v786 = vpack.c.bf16 %v658, %v658
    %v787 = vpack.c.bf16 %v673, %v673
    %v788 = vpack.c.bf16 %v688, %v688
    %v789 = vpack.c.bf16 %v703, %v703
    %v790 = vpack.c.bf16 %v718, %v718
    %v791 = vpack.c.bf16 %v733, %v733
    %v792 = vpack.c.bf16 %v748, %v748
    %v793 = vpack.c.bf16 %v763, %v763
    %v794 = vpack.c.bf16 %v778, %v778
    %v795 = vld [vmem:[%s7] sm:$0xf]
    %v796 = vld [vmem:[%s7 + $0x4] sm:$0xf]
    %v797 = vld [vmem:[%s7 + $0x8] sm:$0xf]
    %v798 = vld [vmem:[%s7 + $0xc] sm:$0xf]
    %v799 = vld [vmem:[%s7 + $0x10] sm:$0xf]
    %v800 = vld [vmem:[%s7 + $0x14] sm:$0xf]
    %v801 = vld [vmem:[%s7 + $0x18] sm:$0xf]
    %v802 = vld [vmem:[%s7 + $0x1c] sm:$0xf]
    %v803 = vld [vmem:[%s7 + $0x20] sm:$0xf]
    %v804 = vld [vmem:[%s7 + $0x24] sm:$0xf]
    %v805 = vld [vmem:[%s7 + $0x28] sm:$0xf]
    %v806 = vld [vmem:[%s7 + $0x2c] sm:$0xf]
    %v807 = vld [vmem:[%s7 + $0x30] sm:$0xf]
    %v808 = vld [vmem:[%s7 + $0x34] sm:$0xf]
    %v809 = vld [vmem:[%s7 + $0x38] sm:$0xf]
    %v810 = vld [vmem:[%s7 + $0x3c] sm:$0xf]
    %v827 = vunpack.c.l.b16 %v779
    %v828 = vunpack.c.l.b16 %v780
    %v829 = vunpack.c.l.b16 %v781
    %v830 = vunpack.c.l.b16 %v782
    %v831 = vunpack.c.l.b16 %v783
    %v832 = vunpack.c.l.b16 %v784
    %v833 = vunpack.c.l.b16 %v785
    %v834 = vunpack.c.l.b16 %v786
    %v835 = vunpack.c.l.b16 %v787
    %v836 = vunpack.c.l.b16 %v788
    %v837 = vunpack.c.l.b16 %v789
    %v838 = vunpack.c.l.b16 %v790
    %v839 = vunpack.c.l.b16 %v791
    %v840 = vunpack.c.l.b16 %v792
    %v841 = vunpack.c.l.b16 %v793
    %v842 = vunpack.c.l.b16 %v794
    %v843 = vpack.c.b16 %v828, %v827
    %v844 = vpack.c.b16 %v830, %v829
    %v845 = vpack.c.b16 %v832, %v831
    %v846 = vpack.c.b16 %v834, %v833
    %v847 = vpack.c.b16 %v836, %v835
    %v848 = vpack.c.b16 %v838, %v837
    %v849 = vpack.c.b16 %v840, %v839
    %v850 = vpack.c.b16 %v842, %v841
    %v875 = vunpack.c.l.b16 %v795
    %v876 = vunpack.c.l.b16 %v796
    %v877 = vunpack.c.l.b16 %v797
    %v878 = vunpack.c.l.b16 %v798
    %v879 = vunpack.c.l.b16 %v799
    %v880 = vunpack.c.l.b16 %v800
    %v881 = vunpack.c.l.b16 %v801
    %v882 = vunpack.c.l.b16 %v802
    %v883 = vunpack.c.l.b16 %v803
    %v884 = vunpack.c.l.b16 %v804
    %v885 = vunpack.c.l.b16 %v805
    %v886 = vunpack.c.l.b16 %v806
    %v887 = vunpack.c.l.b16 %v807
    %v888 = vunpack.c.l.b16 %v808
    %v889 = vunpack.c.l.b16 %v809
    %v890 = vunpack.c.l.b16 %v810
    %v891 = vpack.c.b16 %v876, %v875
    %v892 = vpack.c.b16 %v878, %v877
    %v893 = vpack.c.b16 %v880, %v879
    %v894 = vpack.c.b16 %v882, %v881
    %v895 = vpack.c.b16 %v884, %v883
    %v896 = vpack.c.b16 %v886, %v885
    %v897 = vpack.c.b16 %v888, %v887
    %v898 = vpack.c.b16 %v890, %v889
    %907 = vmatpush.bf16.msra.mxu0 %v898
    %908 = vmatpush.bf16.msra.mxu0 %v897
    %909 = vmatpush.bf16.msra.mxu0 %v896
    %910 = vmatpush.bf16.msra.mxu0 %v895
    %911 = vmatpush.bf16.msra.mxu0 %v894
    %912 = vmatpush.bf16.msra.mxu0 %v893
    %913 = vmatpush.bf16.msra.mxu0 %v892
    %914 = vmatpush.bf16.msra.mxu0 %v891
    %915 = vmatmul.bf16.gmra.mxu0 %v843
    %v916 = vpop.f32.mrf.mxu0
    %v917 = vadd.f32 0.0, %v916
    %v918 = vpop.f32.mrf.mxu0
    %v919 = vadd.f32 0.0, %v918
    %920 = vmatmul.bf16.gmra.mxu0 %v844
    %v921 = vpop.f32.mrf.mxu0
    %v922 = vadd.f32 0.0, %v921
    %v923 = vpop.f32.mrf.mxu0
    %v924 = vadd.f32 0.0, %v923
    %925 = vmatmul.bf16.gmra.mxu0 %v845
    %v926 = vpop.f32.mrf.mxu0
    %v927 = vadd.f32 0.0, %v926
    %v928 = vpop.f32.mrf.mxu0
    %v929 = vadd.f32 0.0, %v928
    %930 = vmatmul.bf16.gmra.mxu0 %v846
    %v931 = vpop.f32.mrf.mxu0
    %v932 = vadd.f32 0.0, %v931
    %v933 = vpop.f32.mrf.mxu0
    %v934 = vadd.f32 0.0, %v933
    %935 = vmatmul.bf16.gmra.mxu0 %v847
    %v936 = vpop.f32.mrf.mxu0
    %v937 = vadd.f32 0.0, %v936
    %v938 = vpop.f32.mrf.mxu0
    %v939 = vadd.f32 0.0, %v938
    %940 = vmatmul.bf16.gmra.mxu0 %v848
    %v941 = vpop.f32.mrf.mxu0
    %v942 = vadd.f32 0.0, %v941
    %v943 = vpop.f32.mrf.mxu0
    %v944 = vadd.f32 0.0, %v943
    %945 = vmatmul.bf16.gmra.mxu0 %v849
    %v946 = vpop.f32.mrf.mxu0
    %v947 = vadd.f32 0.0, %v946
    %v948 = vpop.f32.mrf.mxu0
    %v949 = vadd.f32 0.0, %v948
    %950 = vmatmul.bf16.gmra.mxu0 %v850
    %v951 = vpop.f32.mrf.mxu0
    %v952 = vadd.f32 0.0, %v951
    %v953 = vpop.f32.mrf.mxu0
    %v954 = vadd.f32 0.0, %v953
    %955 = vdwg.mxu0
    %956 = vst [vmem:[#allocation2] sm:$0xf] %v779
    %957 = vst [vmem:[#allocation2 + $0x4] sm:$0xf] %v780
    %958 = vst [vmem:[#allocation2 + $0x8] sm:$0xf] %v781
    %959 = vst [vmem:[#allocation2 + $0xc] sm:$0xf] %v782
    %960 = vst [vmem:[#allocation2 + $0x10] sm:$0xf] %v783
    %961 = vst [vmem:[#allocation2 + $0x14] sm:$0xf] %v784
    %962 = vst [vmem:[#allocation2 + $0x18] sm:$0xf] %v785
    %963 = vst [vmem:[#allocation2 + $0x1c] sm:$0xf] %v786
    %964 = vst [vmem:[#allocation2 + $0x20] sm:$0xf] %v787
    %965 = vst [vmem:[#allocation2 + $0x24] sm:$0xf] %v788
    %966 = vst [vmem:[#allocation2 + $0x28] sm:$0xf] %v789
    %967 = vst [vmem:[#allocation2 + $0x2c] sm:$0xf] %v790
    %968 = vst [vmem:[#allocation2 + $0x30] sm:$0xf] %v791
    %969 = vst [vmem:[#allocation2 + $0x34] sm:$0xf] %v792
    %970 = vst [vmem:[#allocation2 + $0x38] sm:$0xf] %v793
    %971 = vst [vmem:[#allocation2 + $0x3c] sm:$0xf] %v794
    %v972 = vpack.c.bf16 %v917, %v917
    %v973 = vpack.c.bf16 %v919, %v919
    %v974 = vpack.c.bf16 %v922, %v922
    %v975 = vpack.c.bf16 %v924, %v924
    %v976 = vpack.c.bf16 %v927, %v927
    %v977 = vpack.c.bf16 %v929, %v929
    %v978 = vpack.c.bf16 %v932, %v932
    %v979 = vpack.c.bf16 %v934, %v934
    %v980 = vpack.c.bf16 %v937, %v937
    %v981 = vpack.c.bf16 %v939, %v939
    %v982 = vpack.c.bf16 %v942, %v942
    %v983 = vpack.c.bf16 %v944, %v944
    %v984 = vpack.c.bf16 %v947, %v947
    %v985 = vpack.c.bf16 %v949, %v949
    %v986 = vpack.c.bf16 %v952, %v952
    %v987 = vpack.c.bf16 %v954, %v954
    %vm988 = vcmask 519168
    %989 = vst.msk [vmem:[%s9] sm:$0xf] %vm988, %v972
    %990 = vst.msk [vmem:[%s9 + $0x4] sm:$0xf] %vm988, %v973
    %991 = vst.msk [vmem:[%s9 + $0x8] sm:$0xf] %vm988, %v974
    %992 = vst.msk [vmem:[%s9 + $0xc] sm:$0xf] %vm988, %v975
    %993 = vst.msk [vmem:[%s9 + $0x10] sm:$0xf] %vm988, %v976
    %994 = vst.msk [vmem:[%s9 + $0x14] sm:$0xf] %vm988, %v977
    %995 = vst.msk [vmem:[%s9 + $0x18] sm:$0xf] %vm988, %v978
    %996 = vst.msk [vmem:[%s9 + $0x1c] sm:$0xf] %vm988, %v979
    %997 = vst.msk [vmem:[%s9 + $0x20] sm:$0xf] %vm988, %v980
    %998 = vst.msk [vmem:[%s9 + $0x24] sm:$0xf] %vm988, %v981
    %999 = vst.msk [vmem:[%s9 + $0x28] sm:$0xf] %vm988, %v982
    %1000 = vst.msk [vmem:[%s9 + $0x2c] sm:$0xf] %vm988, %v983
    %1001 = vst.msk [vmem:[%s9 + $0x30] sm:$0xf] %vm988, %v984
    %1002 = vst.msk [vmem:[%s9 + $0x34] sm:$0xf] %vm988, %v985
    %1003 = vst.msk [vmem:[%s9 + $0x38] sm:$0xf] %vm988, %v986
    %1004 = vst.msk [vmem:[%s9 + $0x3c] sm:$0xf] %vm988, %v987
    // Predicated region
    $region34: #{tpu_custom_call.1} parent=1 // pred_check
      _
    $region35: #{tpu_custom_call.1} parent=1 // pred_check_branch
      %1006 = sbr.rel (0) target = $region37
    $region36: #{tpu_custom_call.1} parent=1 // pred_region
      %1008 = vsyncadd [#allocation3], 0
      %s1009 = sshll.u32 [#allocation2], 4
      %s1010 = int_to_ptr.vmem [resolvable:$true] %s1009
      %s1011 = sshll.u32 %s8, 4
      %s1012 = int_to_ptr.hbm [resolvable:$true] %s1011
      %1017 = dma.vmem_to_hbm [thread:$0]  %s1010, 1024, %s1012, [#allocation3], 64, 64, 4
    $region37: #{tpu_custom_call.1} parent=1 // pred_fallthru
      _
    // Predicated region
    $region38: #{tpu_custom_call.1} parent=1 // pred_check
      _
    $region39: #{tpu_custom_call.1} parent=1 // pred_check_branch
      %1019 = sbr.rel (0) target = $region41
    $region40: #{tpu_custom_call.1} parent=1 // pred_region
      _
    $region41: #{tpu_custom_call.1} parent=1 // pred_fallthru
      _
    // Predicated region
    $region42: #{tpu_custom_call.1} parent=1 // pred_check
      _
    $region43: #{tpu_custom_call.1} parent=1 // pred_check_branch
      %1021 = sbr.rel (0) target = $region45
    $region44: #{tpu_custom_call.1} parent=1 // pred_region
      %1023 = dma.done [#allocation3], 1024
    $region45: #{tpu_custom_call.1} parent=1 // pred_fallthru
      _
    // Predicated region
    $region46: #{tpu_custom_call.1} parent=1 // pred_check
      _
    $region47: #{tpu_custom_call.1} parent=1 // pred_check_branch
      %1025 = sbr.rel (0) target = $region49
    $region48: #{tpu_custom_call.1} parent=1 // pred_region
      _
    $region49: #{tpu_custom_call.1} parent=1 // pred_fallthru
      _
    %1026 = vsyncpa [#allocation3], 1

</llo_original>
